<compile_context>
chip_gen: v7x
topology: tpu7x:2x2x1
jax: 0.10.0
libtpu: 0.0.40
codegen_flags: <defaults>
</compile_context>

<pallas_src>
import jax
import jax.numpy as jnp
import numpy as np
from jax.experimental import pallas as pl
from jax.experimental.pallas import tpu as pltpu

_ISSUE_UNROLL = 8


def _embed_lora_kernel(ids_smem, tbl_hbm, bTs_ref, o_ref, rows, sem):
    """One grid step = TM tokens.

    ids_smem : (N_chunk,) int32 SMEM (scalar prefetch)  flattened token ids
    tbl_hbm  : (V, H+R) f32 HBM                         [weight | lora_left.T]
    bTs_ref  : (R, H)   f32 VMEM (grid-resident)        lora_right.T * scale
    o_ref    : (TM, H)  f32 VMEM                        output tile
    rows     : (TM, H+R) f32 VMEM scratch               gathered fused rows
    sem      : (1,) DMA semaphore
    """
    t = pl.program_id(0)
    tm = o_ref.shape[0]
    h = o_ref.shape[1]

    base = pl.multiple_of(t * tm, tm)

    # ---- issue: one DMA descriptor per token, gathering the fused
    # [embedding | lora_A] row.  Unrolled x8 so address math / SMEM loads /
    # descriptor pushes pipeline on the scalar + misc slots.
    @pl.loop(0, tm // _ISSUE_UNROLL)
    def _issue(step):
        i0 = pl.multiple_of(step * _ISSUE_UNROLL, _ISSUE_UNROLL)
        for u in range(_ISSUE_UNROLL):
            i = i0 + u
            row = ids_smem[base + i]
            pltpu.make_async_copy(
                tbl_hbm.at[pl.ds(row, 1), :],
                rows.at[pl.ds(i, 1), :],
                sem.at[0],
            ).start()

    # ---- wait: single wait whose descriptor covers the whole (TM, H+R)
    # scratch; its byte count equals the sum of the TM row copies above, so
    # one wait releases all of them.
    pltpu.make_async_copy(tbl_hbm.at[pl.ds(0, tm), :], rows, sem.at[0]).wait()

    # ---- compute: LoRA low-rank projection on the MXU (scale pre-folded into
    # bTs) fused with the embedding add; lane-dense (TM, H) store.
    emb = rows[:, :h]                       # (TM, H)
    lora_a = rows[:, h:]                    # (TM, R)
    lora = jnp.dot(lora_a, bTs_ref[...], preferred_element_type=jnp.float32)
    o_ref[...] = (emb + lora).astype(o_ref.dtype)


def _embed_lora_chunk(ids_chunk, table, right_t_scaled, *, token_tile):
    n_chunk = ids_chunk.shape[0]
    _, hr = table.shape
    r, h = right_t_scaled.shape
    grid = (n_chunk // token_tile,)

    return pl.pallas_call(
        _embed_lora_kernel,
        out_shape=jax.ShapeDtypeStruct((n_chunk, h), jnp.float32),
        grid_spec=pltpu.PrefetchScalarGridSpec(
            num_scalar_prefetch=1,
            grid=grid,
            in_specs=[
                pl.BlockSpec(memory_space=pl.ANY),            # fused table in HBM
                pl.BlockSpec((r, h), lambda i, ids: (0, 0)),  # right_t resident
            ],
            out_specs=pl.BlockSpec((token_tile, h), lambda i, ids: (i, 0)),
            scratch_shapes=[
                pltpu.VMEM((token_tile, hr), jnp.float32),    # gathered fused rows
                pltpu.SemaphoreType.DMA((1,)),
            ],
        ),
        compiler_params=pltpu.CompilerParams(
            dimension_semantics=("parallel",),   # split token tiles across TCs (v7x)
            vmem_limit_bytes=32 << 20,           # fits v7x 64 MiB; raise on v5e/v6e
        ),
    )(ids_chunk, table, right_t_scaled)


def vocab_parallel_embedding_lora(ids, weight, lora_left, lora_right,
                                  lora_scaling=1.0, *, token_tile=128,
                                  max_tokens_per_call=32768):
    """ids: (B, S) int; weight: (V, H); lora_left: (r, V); lora_right: (H, r)."""
    b, s = ids.shape
    v, h = weight.shape
    r = lora_left.shape[0]
    scale = float(lora_scaling) / float(r)

    assert token_tile % _ISSUE_UNROLL == 0
    assert max_tokens_per_call % token_tile == 0

    n = b * s
    n_pad = ((n + token_tile - 1) // token_tile) * token_tile

    # Flatten + clamp ids (F.embedding requires in-range ids; the padded tail
    # uses id 0 and is sliced away below).
    ids_flat = jnp.clip(ids.reshape(n).astype(jnp.int32), 0, v - 1)
    if n_pad != n:
        ids_flat = jnp.pad(ids_flat, (0, n_pad - n))

    # Fused gather table [weight | lora_left.T]: one (H+R)-wide row per token.
    # (In a real deployment this concat would be prepared once, not per step.)
    table = jnp.concatenate(
        [weight.astype(jnp.float32), lora_left.T.astype(jnp.float32)], axis=1)
    right_t_scaled = (lora_right.T * scale).astype(jnp.float32)   # (r, H)

    # Chunk the call so the scalar-prefetched id array stays within SMEM.
    chunks = []
    for c0 in range(0, n_pad, max_tokens_per_call):
        chunks.append(
            _embed_lora_chunk(ids_flat[c0:c0 + max_tokens_per_call],
                              table, right_t_scaled, token_tile=token_tile))
    out = chunks[0] if len(chunks) == 1 else jnp.concatenate(chunks, axis=0)

    return out[:n].reshape(b, s, h)


def _reference(ids, weight, lora_left, lora_right, lora_scaling):
    r = lora_left.shape[0]
    scale = lora_scaling / r
    emb = weight[ids]                                     # (B, S, H)
    after_a = lora_left.T[ids]                            # (B, S, r)
    return emb + (after_a @ lora_right.T) * scale


if __name__ == "__main__":
    # Small, module-consistent shapes.
    B, S = 2, 8          # batch, sequence
    V, H = 256, 128      # num_embeddings (rows), hidden (columns)
    R = 8                # lora_dim
    LORA_SCALING = 2.0

    key = jax.random.PRNGKey(0)
    k_ids, k_w, k_a, k_b = jax.random.split(key, 4)

    ids = jax.random.randint(k_ids, (B, S), 0, V, dtype=jnp.int32)
    weight = jax.random.normal(k_w, (V, H), dtype=jnp.float32) * 0.02

    # lora_right_weight: (columns, lora_dim) -> kaiming_uniform_(a=sqrt(5)) over
    # fan_in=columns gives bound = 1/sqrt(fan_in).
    bound = 1.0 / np.sqrt(H)
    lora_right = jax.random.uniform(k_b, (H, R), dtype=jnp.float32,
                                    minval=-bound, maxval=bound)
    # lora_left_weight: (lora_dim, rows). Module init is zeros; use small random
    # values here so the LoRA path actually contributes in this synthetic test.
    lora_left = jax.random.normal(k_a, (R, V), dtype=jnp.float32) * 0.05

    out = vocab_parallel_embedding_lora(ids, weight, lora_left, lora_right,
                                        lora_scaling=LORA_SCALING)
    out = jax.block_until_ready(out)

    ref = _reference(ids, weight, lora_left, lora_right, LORA_SCALING)
    np.testing.assert_allclose(np.asarray(out), np.asarray(ref),
                               rtol=1e-5, atol=1e-5)
    print("KERNEL_OK")
</pallas_src>

<mosaic_0001>
module attributes {stable_mosaic.version = 11 : i64} {
  func.func @_embed_lora_kernel(%arg0: i32, %arg1: memref<128xi32, #tpu.memory_space<smem>>, %arg2: memref<256x136xf32, #tpu.memory_space<any>>, %arg3: memref<8x128xf32, #tpu.memory_space<vmem>>, %arg4: memref<128x128xf32, #tpu.memory_space<vmem>>, %arg5: memref<128x136xf32, #tpu.memory_space<vmem>>, %arg6: memref<1x!tpu.dma_semaphore, #tpu.memory_space<semaphore_mem>>) attributes {dimension_semantics = [#tpu.dimension_semantics<parallel>], iteration_bounds = array<i64: 1>, scalar_prefetch = 1 : i64, scratch_operands = 2 : i64, tpu.core_type = #tpu.core_type<tc>, window_params = [{}, {pipeline_mode = #tpu.pipeline_mode<synchronous>, transform_indices = @transform_1, window_bounds = array<i64: 8, 128>}, {transform_indices = @transform_2, window_bounds = array<i64: 128, 128>}]} {
    %c128_i32 = arith.constant 128 : i32
    %0 = arith.muli %arg0, %c128_i32 : i32
    %1 = tpu.assume_multiple %0, 128 : i32
    %c0_i32 = arith.constant 0 : i32
    %c16_i32 = arith.constant 16 : i32
    %2 = arith.addi %c0_i32, %c16_i32 : i32
    %c1_i32 = arith.constant 1 : i32
    scf.for %arg7 = %c0_i32 to %2 step %c1_i32  : i32 {
      %c1_i32_10 = arith.constant 1 : i32
      %12 = arith.muli %arg7, %c1_i32_10 : i32
      %c0_i32_11 = arith.constant 0 : i32
      %13 = arith.addi %c0_i32_11, %12 : i32
      %c8_i32 = arith.constant 8 : i32
      %14 = arith.muli %13, %c8_i32 : i32
      %15 = tpu.assume_multiple %14, 8 : i32
      %c0_i32_12 = arith.constant 0 : i32
      %16 = arith.addi %15, %c0_i32_12 : i32
      %17 = arith.addi %1, %16 : i32
      %18 = arith.index_cast %17 : i32 to index
      %19 = memref.load %arg1[%18] : memref<128xi32, #tpu.memory_space<smem>>
      %c0_i32_13 = arith.constant 0 : i32
      %c0_i32_14 = arith.constant 0 : i32
      %20 = tpu.memref_slice %arg2[%19, %c0_i32_14] : memref<256x136xf32, #tpu.memory_space<any>> -> memref<1x136xf32, #tpu.memory_space<any>>
      %c0_i32_15 = arith.constant 0 : i32
      %21 = tpu.memref_slice %arg5[%16, %c0_i32_15] : memref<128x136xf32, #tpu.memory_space<vmem>> -> memref<1x136xf32, #tpu.memory_space<vmem>>
      %22 = tpu.memref_slice %arg6[%c0_i32_13] : memref<1x!tpu.dma_semaphore, #tpu.memory_space<semaphore_mem>> -> memref<1x!tpu.dma_semaphore, #tpu.memory_space<semaphore_mem>>
      %23 = tpu.memref_squeeze %22 : memref<1x!tpu.dma_semaphore, #tpu.memory_space<semaphore_mem>> -> memref<!tpu.dma_semaphore, #tpu.memory_space<semaphore_mem>>
      tpu.enqueue_dma source(%20 : memref<1x136xf32, #tpu.memory_space<any>>) target(%21 : memref<1x136xf32, #tpu.memory_space<vmem>>) target_semaphore(%23 : memref<!tpu.dma_semaphore, #tpu.memory_space<semaphore_mem>>)
      %c1_i32_16 = arith.constant 1 : i32
      %24 = arith.addi %15, %c1_i32_16 : i32
      %25 = arith.addi %1, %24 : i32
      %26 = arith.index_cast %25 : i32 to index
      %27 = memref.load %arg1[%26] : memref<128xi32, #tpu.memory_space<smem>>
      %c0_i32_17 = arith.constant 0 : i32
      %c0_i32_18 = arith.constant 0 : i32
      %28 = tpu.memref_slice %arg2[%27, %c0_i32_18] : memref<256x136xf32, #tpu.memory_space<any>> -> memref<1x136xf32, #tpu.memory_space<any>>
      %c0_i32_19 = arith.constant 0 : i32
      %29 = tpu.memref_slice %arg5[%24, %c0_i32_19] : memref<128x136xf32, #tpu.memory_space<vmem>> -> memref<1x136xf32, #tpu.memory_space<vmem>>
      %30 = tpu.memref_slice %arg6[%c0_i32_17] : memref<1x!tpu.dma_semaphore, #tpu.memory_space<semaphore_mem>> -> memref<1x!tpu.dma_semaphore, #tpu.memory_space<semaphore_mem>>
      %31 = tpu.memref_squeeze %30 : memref<1x!tpu.dma_semaphore, #tpu.memory_space<semaphore_mem>> -> memref<!tpu.dma_semaphore, #tpu.memory_space<semaphore_mem>>
      tpu.enqueue_dma source(%28 : memref<1x136xf32, #tpu.memory_space<any>>) target(%29 : memref<1x136xf32, #tpu.memory_space<vmem>>) target_semaphore(%31 : memref<!tpu.dma_semaphore, #tpu.memory_space<semaphore_mem>>)
      %c2_i32 = arith.constant 2 : i32
      %32 = arith.addi %15, %c2_i32 : i32
      %33 = arith.addi %1, %32 : i32
      %34 = arith.index_cast %33 : i32 to index
      %35 = memref.load %arg1[%34] : memref<128xi32, #tpu.memory_space<smem>>
      %c0_i32_20 = arith.constant 0 : i32
      %c0_i32_21 = arith.constant 0 : i32
      %36 = tpu.memref_slice %arg2[%35, %c0_i32_21] : memref<256x136xf32, #tpu.memory_space<any>> -> memref<1x136xf32, #tpu.memory_space<any>>
      %c0_i32_22 = arith.constant 0 : i32
      %37 = tpu.memref_slice %arg5[%32, %c0_i32_22] : memref<128x136xf32, #tpu.memory_space<vmem>> -> memref<1x136xf32, #tpu.memory_space<vmem>>
      %38 = tpu.memref_slice %arg6[%c0_i32_20] : memref<1x!tpu.dma_semaphore, #tpu.memory_space<semaphore_mem>> -> memref<1x!tpu.dma_semaphore, #tpu.memory_space<semaphore_mem>>
      %39 = tpu.memref_squeeze %38 : memref<1x!tpu.dma_semaphore, #tpu.memory_space<semaphore_mem>> -> memref<!tpu.dma_semaphore, #tpu.memory_space<semaphore_mem>>
      tpu.enqueue_dma source(%36 : memref<1x136xf32, #tpu.memory_space<any>>) target(%37 : memref<1x136xf32, #tpu.memory_space<vmem>>) target_semaphore(%39 : memref<!tpu.dma_semaphore, #tpu.memory_space<semaphore_mem>>)
      %c3_i32 = arith.constant 3 : i32
      %40 = arith.addi %15, %c3_i32 : i32
      %41 = arith.addi %1, %40 : i32
      %42 = arith.index_cast %41 : i32 to index
      %43 = memref.load %arg1[%42] : memref<128xi32, #tpu.memory_space<smem>>
      %c0_i32_23 = arith.constant 0 : i32
      %c0_i32_24 = arith.constant 0 : i32
      %44 = tpu.memref_slice %arg2[%43, %c0_i32_24] : memref<256x136xf32, #tpu.memory_space<any>> -> memref<1x136xf32, #tpu.memory_space<any>>
      %c0_i32_25 = arith.constant 0 : i32
      %45 = tpu.memref_slice %arg5[%40, %c0_i32_25] : memref<128x136xf32, #tpu.memory_space<vmem>> -> memref<1x136xf32, #tpu.memory_space<vmem>>
      %46 = tpu.memref_slice %arg6[%c0_i32_23] : memref<1x!tpu.dma_semaphore, #tpu.memory_space<semaphore_mem>> -> memref<1x!tpu.dma_semaphore, #tpu.memory_space<semaphore_mem>>
      %47 = tpu.memref_squeeze %46 : memref<1x!tpu.dma_semaphore, #tpu.memory_space<semaphore_mem>> -> memref<!tpu.dma_semaphore, #tpu.memory_space<semaphore_mem>>
      tpu.enqueue_dma source(%44 : memref<1x136xf32, #tpu.memory_space<any>>) target(%45 : memref<1x136xf32, #tpu.memory_space<vmem>>) target_semaphore(%47 : memref<!tpu.dma_semaphore, #tpu.memory_space<semaphore_mem>>)
      %c4_i32 = arith.constant 4 : i32
      %48 = arith.addi %15, %c4_i32 : i32
      %49 = arith.addi %1, %48 : i32
      %50 = arith.index_cast %49 : i32 to index
      %51 = memref.load %arg1[%50] : memref<128xi32, #tpu.memory_space<smem>>
      %c0_i32_26 = arith.constant 0 : i32
      %c0_i32_27 = arith.constant 0 : i32
      %52 = tpu.memref_slice %arg2[%51, %c0_i32_27] : memref<256x136xf32, #tpu.memory_space<any>> -> memref<1x136xf32, #tpu.memory_space<any>>
      %c0_i32_28 = arith.constant 0 : i32
      %53 = tpu.memref_slice %arg5[%48, %c0_i32_28] : memref<128x136xf32, #tpu.memory_space<vmem>> -> memref<1x136xf32, #tpu.memory_space<vmem>>
      %54 = tpu.memref_slice %arg6[%c0_i32_26] : memref<1x!tpu.dma_semaphore, #tpu.memory_space<semaphore_mem>> -> memref<1x!tpu.dma_semaphore, #tpu.memory_space<semaphore_mem>>
      %55 = tpu.memref_squeeze %54 : memref<1x!tpu.dma_semaphore, #tpu.memory_space<semaphore_mem>> -> memref<!tpu.dma_semaphore, #tpu.memory_space<semaphore_mem>>
      tpu.enqueue_dma source(%52 : memref<1x136xf32, #tpu.memory_space<any>>) target(%53 : memref<1x136xf32, #tpu.memory_space<vmem>>) target_semaphore(%55 : memref<!tpu.dma_semaphore, #tpu.memory_space<semaphore_mem>>)
      %c5_i32 = arith.constant 5 : i32
      %56 = arith.addi %15, %c5_i32 : i32
      %57 = arith.addi %1, %56 : i32
      %58 = arith.index_cast %57 : i32 to index
      %59 = memref.load %arg1[%58] : memref<128xi32, #tpu.memory_space<smem>>
      %c0_i32_29 = arith.constant 0 : i32
      %c0_i32_30 = arith.constant 0 : i32
      %60 = tpu.memref_slice %arg2[%59, %c0_i32_30] : memref<256x136xf32, #tpu.memory_space<any>> -> memref<1x136xf32, #tpu.memory_space<any>>
      %c0_i32_31 = arith.constant 0 : i32
      %61 = tpu.memref_slice %arg5[%56, %c0_i32_31] : memref<128x136xf32, #tpu.memory_space<vmem>> -> memref<1x136xf32, #tpu.memory_space<vmem>>
      %62 = tpu.memref_slice %arg6[%c0_i32_29] : memref<1x!tpu.dma_semaphore, #tpu.memory_space<semaphore_mem>> -> memref<1x!tpu.dma_semaphore, #tpu.memory_space<semaphore_mem>>
      %63 = tpu.memref_squeeze %62 : memref<1x!tpu.dma_semaphore, #tpu.memory_space<semaphore_mem>> -> memref<!tpu.dma_semaphore, #tpu.memory_space<semaphore_mem>>
      tpu.enqueue_dma source(%60 : memref<1x136xf32, #tpu.memory_space<any>>) target(%61 : memref<1x136xf32, #tpu.memory_space<vmem>>) target_semaphore(%63 : memref<!tpu.dma_semaphore, #tpu.memory_space<semaphore_mem>>)
      %c6_i32 = arith.constant 6 : i32
      %64 = arith.addi %15, %c6_i32 : i32
      %65 = arith.addi %1, %64 : i32
      %66 = arith.index_cast %65 : i32 to index
      %67 = memref.load %arg1[%66] : memref<128xi32, #tpu.memory_space<smem>>
      %c0_i32_32 = arith.constant 0 : i32
      %c0_i32_33 = arith.constant 0 : i32
      %68 = tpu.memref_slice %arg2[%67, %c0_i32_33] : memref<256x136xf32, #tpu.memory_space<any>> -> memref<1x136xf32, #tpu.memory_space<any>>
      %c0_i32_34 = arith.constant 0 : i32
      %69 = tpu.memref_slice %arg5[%64, %c0_i32_34] : memref<128x136xf32, #tpu.memory_space<vmem>> -> memref<1x136xf32, #tpu.memory_space<vmem>>
      %70 = tpu.memref_slice %arg6[%c0_i32_32] : memref<1x!tpu.dma_semaphore, #tpu.memory_space<semaphore_mem>> -> memref<1x!tpu.dma_semaphore, #tpu.memory_space<semaphore_mem>>
      %71 = tpu.memref_squeeze %70 : memref<1x!tpu.dma_semaphore, #tpu.memory_space<semaphore_mem>> -> memref<!tpu.dma_semaphore, #tpu.memory_space<semaphore_mem>>
      tpu.enqueue_dma source(%68 : memref<1x136xf32, #tpu.memory_space<any>>) target(%69 : memref<1x136xf32, #tpu.memory_space<vmem>>) target_semaphore(%71 : memref<!tpu.dma_semaphore, #tpu.memory_space<semaphore_mem>>)
      %c7_i32 = arith.constant 7 : i32
      %72 = arith.addi %15, %c7_i32 : i32
      %73 = arith.addi %1, %72 : i32
      %74 = arith.index_cast %73 : i32 to index
      %75 = memref.load %arg1[%74] : memref<128xi32, #tpu.memory_space<smem>>
      %c0_i32_35 = arith.constant 0 : i32
      %c0_i32_36 = arith.constant 0 : i32
      %76 = tpu.memref_slice %arg2[%75, %c0_i32_36] : memref<256x136xf32, #tpu.memory_space<any>> -> memref<1x136xf32, #tpu.memory_space<any>>
      %c0_i32_37 = arith.constant 0 : i32
      %77 = tpu.memref_slice %arg5[%72, %c0_i32_37] : memref<128x136xf32, #tpu.memory_space<vmem>> -> memref<1x136xf32, #tpu.memory_space<vmem>>
      %78 = tpu.memref_slice %arg6[%c0_i32_35] : memref<1x!tpu.dma_semaphore, #tpu.memory_space<semaphore_mem>> -> memref<1x!tpu.dma_semaphore, #tpu.memory_space<semaphore_mem>>
      %79 = tpu.memref_squeeze %78 : memref<1x!tpu.dma_semaphore, #tpu.memory_space<semaphore_mem>> -> memref<!tpu.dma_semaphore, #tpu.memory_space<semaphore_mem>>
      tpu.enqueue_dma source(%76 : memref<1x136xf32, #tpu.memory_space<any>>) target(%77 : memref<1x136xf32, #tpu.memory_space<vmem>>) target_semaphore(%79 : memref<!tpu.dma_semaphore, #tpu.memory_space<semaphore_mem>>)
    }
    %c16_i32_0 = arith.constant 16 : i32
    %c0_i32_1 = arith.constant 0 : i32
    %c0_i32_2 = arith.constant 0 : i32
    %c0_i32_3 = arith.constant 0 : i32
    %3 = tpu.memref_slice %arg2[%c0_i32_2, %c0_i32_3] : memref<256x136xf32, #tpu.memory_space<any>> -> memref<128x136xf32, #tpu.memory_space<any>>
    %4 = tpu.memref_slice %arg6[%c0_i32_1] : memref<1x!tpu.dma_semaphore, #tpu.memory_space<semaphore_mem>> -> memref<1x!tpu.dma_semaphore, #tpu.memory_space<semaphore_mem>>
    %5 = tpu.memref_squeeze %4 : memref<1x!tpu.dma_semaphore, #tpu.memory_space<semaphore_mem>> -> memref<!tpu.dma_semaphore, #tpu.memory_space<semaphore_mem>>
    tpu.wait_dma2 semaphore(%5 : memref<!tpu.dma_semaphore, #tpu.memory_space<semaphore_mem>>) src(%3 : memref<128x136xf32, #tpu.memory_space<any>>) dst(%arg5 : memref<128x136xf32, #tpu.memory_space<vmem>>)
    %c0 = arith.constant 0 : index
    %c0_4 = arith.constant 0 : index
    %6 = vector.load %arg5[%c0, %c0_4] : memref<128x136xf32, #tpu.memory_space<vmem>>, vector<128x128xf32>
    %c0_5 = arith.constant 0 : index
    %c128 = arith.constant 128 : index
    %7 = vector.load %arg5[%c0_5, %c128] : memref<128x136xf32, #tpu.memory_space<vmem>>, vector<128x8xf32>
    %c0_6 = arith.constant 0 : index
    %c0_7 = arith.constant 0 : index
    %8 = vector.load %arg3[%c0_6, %c0_7] : memref<8x128xf32, #tpu.memory_space<vmem>>, vector<8x128xf32>
    %cst = arith.constant dense<0.000000e+00> : vector<128x128xf32>
    %9 = tpu.matmul %7, %8, %cst {dimension_numbers = #tpu.dot_dimension_numbers<[1], [0], [0], [1], [0, 0, 1, 1], [], []>} : vector<128x8xf32>, vector<8x128xf32>, vector<128x128xf32> -> vector<128x128xf32>
    %10 = arith.addf %6, %9 : vector<128x128xf32>
    %c0_8 = arith.constant 0 : index
    %c0_9 = arith.constant 0 : index
    %11 = vector.load %arg4[%c0_8, %c0_9] : memref<128x128xf32, #tpu.memory_space<vmem>>, vector<128x128xf32>
    tpu.vector_store %arg4[%c0_8, %c0_9], %10 {strides = array<i32>} : memref<128x128xf32, #tpu.memory_space<vmem>>, vector<128x128xf32>,
    return
  }
  func.func @transform_1(%arg0: i32, %arg1: memref<128xi32, #tpu.memory_space<smem>>) -> (i32, i32) {
    %c0_i32 = arith.constant 0 : i32
    %c0_i32_0 = arith.constant 0 : i32
    %c0_i32_1 = arith.constant 0 : i32
    return %c0_i32, %c0_i32_0 : i32, i32
  }
  func.func @transform_2(%arg0: i32, %arg1: memref<128xi32, #tpu.memory_space<smem>>) -> (i32, i32) {
    %c0_i32 = arith.constant 0 : i32
    %c0_i32_0 = arith.constant 0 : i32
    return %arg0, %c0_i32 : i32, i32
  }
}

</mosaic_0001>

<llo_original>
// kernel: tpu_custom_call.1
$region0: #{tpu_custom_call.1}
  #allocation0 [shape = 'u32[]', space=smem, size = 0x4, offset = 0x4, fixed_abs, tag = 'smem constant byte address 0x4 - core index']
  #allocation1 [shape = 'u32[144,128]{1,0:T(1,128)}', space=vmem, size = 0x12000, scoped, tag = 'internal scratch']
  #allocation2 [shape = 'f32[128,136]{1,0:T(8,128)}', space=vmem, size = 0x20000, scoped, tag = 'scratch operand']
  #allocation3 [shape = 's32[1]{0}', space=sflag, size = 0x4, scoped, tag = 'scratch operand']
  #allocation4 [shape = 's32[1]{0}', space=sflag, size = 0x4, scoped, tag = 'scoped memory for tpu_custom_call.1']
  #allocation5 [shape = 'u8[512]{0}', space=smem, size = 0x200, scoped, tag = 'prefetched SMEM operand 0']
  #allocation8 [shape = 's32[]', space=sflag, size = 0x4, offset = 0, fixed_abs, tag = 'sflag constant byte address 0x0 - dummy sync flag']
  #allocation9 [shape = 's32[]', space=sflag, size = 0x4, offset = 0, fixed_abs, tag = 'sflag constant byte address 0x0 - dummy sync flag']
  #allocation10 [shape = 's32[]', space=sflag, size = 0x4, offset = 0, fixed_abs, tag = 'sflag constant byte address 0x0 - dummy sync flag']
  #allocation11 [shape = 's32[]', space=sflag, size = 0x4, offset = 0, fixed_abs, tag = 'sflag constant byte address 0x0 - dummy sync flag']
  #allocation12 [shape = 's32[]', space=sflag, size = 0x4, offset = 0, fixed_abs, tag = 'sflag constant byte address 0x0 - dummy sync flag']
  #allocation13 [shape = 's32[]', space=sflag, size = 0x4, offset = 0, fixed_abs, tag = 'sflag constant byte address 0x0 - dummy sync flag']
  #allocation14 [shape = 's32[]', space=sflag, size = 0x4, offset = 0, fixed_abs, tag = 'sflag constant byte address 0x0 - dummy sync flag']
  #allocation15 [shape = 's32[]', space=sflag, size = 0x4, offset = 0, fixed_abs, tag = 'sflag constant byte address 0x0 - dummy sync flag']
  %s0 = inlined_call_operand.vmem [shape: s32[128], index: 0, kind: input, shape index: {}]
  %s1 = inlined_call_operand.vmem [shape: f32[256,136], index: 1, kind: input, shape index: {}]
  %s2 = inlined_call_operand.vmem [shape: f32[8,128], index: 2, kind: input, shape index: {}]
  %s3 = inlined_call_operand.hbm [shape: f32[128,128], index: 3, kind: output, shape index: {}]
  %s4 = sld [smem:[#allocation0]]
  $region261: #{tpu_custom_call.1} parent=0
    _
  %s6 = ssub.s32 1, %s4
  %s7 = scalar_select 0, %s6, %s4
  %s8 = sshll.u32 %s0, 4
  %s9 = int_to_ptr.vmem [resolvable:$true] %s8
  %11 = dma.vmem_to_smem %s9, 16, [#allocation5], [#allocation4]
  %12 = dma.done [#allocation4], 16
  %13 = sfence
  $region1: #{tpu_custom_call.1} parent=0
    #allocation6 [shape = 'u8[65536]{0}', space=vmem, size = 0x10000, scoped, tag = 'output window, operand 0, single buffered']
    #allocation7 [shape = 's32[1]{0}', space=sflag, size = 0x4, scoped, tag = 'scoped memory for tpu_custom_call.1']
    %14 = vsyncpa [#allocation7], 0
    // Predicated region
    $region2: #{tpu_custom_call.1} parent=1 // pred_check
      _
    $region3: #{tpu_custom_call.1} parent=1 // pred_check_branch
      %16 = sbr.rel (0) target = $region5
    $region4: #{tpu_custom_call.1} parent=1 // pred_region
      _
    $region5: #{tpu_custom_call.1} parent=1 // pred_fallthru
      _
    %s17 = smul.u32 0, 128
    loop: start=0, step=1, limit=16
    $region6: #{tpu_custom_call.1} parent=1 // loop_pre_header
      _
    $region7: #{tpu_custom_call.1} parent=1 // loop_header
      %s19 = sphi 0, %s23
      %p20 = scmp.ge.s32.totalorder %s19, 16
    $region8: #{tpu_custom_call.1} parent=1 // loop_header_branch
      %22 = sbr.rel (%p20) target = $region12
    $region9: #{tpu_custom_call.1} parent=1 // loop_body
      %s24 = smul.u32 %s19, 8
      %s25 = sadd.s32 %s17, %s24
      %s26 = sld [smem:[#allocation5 + %s25]]
      %s27 = sshrl.u32 %s26, 3
      %s28 = sand.u32 %s26, 7
      %s29 = smul.u32 %s27, 16
      %s30 = sadd.s32 %s28, %s29
      %s31 = scalar_lea.vmem %s1, %s30
      %s32 = sshrl.u32 %s24, 3
      %s33 = sand.u32 %s24, 7
      %s34 = smul.u32 %s32, 16
      %s35 = sadd.s32 %s33, %s34
      %s36 = scalar_lea.vmem [#allocation2], %s35
      %p38 = scmp.lt.u32.totalorder 1, 8
      %p39 = pneg %p38
      // Predicated region
      $region13: #{tpu_custom_call.1} parent=9 // pred_check
        _
      $region14: #{tpu_custom_call.1} parent=9 // pred_check_branch
        %41 = sbr.rel (%p38) target = $region16
      $region15: #{tpu_custom_call.1} parent=9 // pred_region
        %s58 = sand.u32 1, 7
        %p59 = scmp.eq.s32.totalorder %s58, 0
        %p60 = pneg %p59
        // Predicated region
        $region28: #{tpu_custom_call.1} parent=15 // pred_check
          _
        $region29: #{tpu_custom_call.1} parent=15 // pred_check_branch
          %62 = sbr.rel (%p59) target = $region31
        $region30: #{tpu_custom_call.1} parent=15 // pred_region
          %s63 = sand.u32 1, 7
          %s64 = ssub.s32 1, %s63
          %s65 = scalar_lea.vmem %s31, %s64
          %s66 = ssub.s32 1, %s63
          %s67 = scalar_lea.vmem %s36, %s66 [#allocation2]
          %s68 = sshllo.u32 0, %s63
          loop: start=0, step=1, limit=1
          $region32: #{tpu_custom_call.1} parent=30 // loop_pre_header
            _
          $region33: #{tpu_custom_call.1} parent=30 // loop_header
            %s70 = sphi 0, %s74
            %p71 = scmp.ge.s32.totalorder %s70, 1
            %s75 = sphi %s65, %s65
            %s76 = sphi %s67, %s67
          $region34: #{tpu_custom_call.1} parent=30 // loop_header_branch
            %73 = sbr.rel (%p71) target = $region38
          $region35: #{tpu_custom_call.1} parent=30 // loop_body
            %v77 = vld [vmem:[%s75] sm:%s68]
            %78 = vst [vmem:[%s76] sm:%s68] %v77
            %v79 = vld [vmem:[%s75 + $0x8] sm:%s68]
            %80 = vst [vmem:[%s76 + $0x8] sm:%s68] %v79
          $region36: #{tpu_custom_call.1} parent=30 // loop_footer
            %s74 = sadd.s32 1, %s70
          $region37: #{tpu_custom_call.1} parent=30 // loop_footer_branch
            %69 = sbr.rel target = $region33
          $region38: #{tpu_custom_call.1} parent=30 // loop_exit
            _
        $region31: #{tpu_custom_call.1} parent=15 // pred_fallthru
          _
      $region16: #{tpu_custom_call.1} parent=9 // pred_fallthru
        _
      // Predicated region
      $region17: #{tpu_custom_call.1} parent=9 // pred_check
        %p42 = pneg %p38
      $region18: #{tpu_custom_call.1} parent=9 // pred_check_branch
        %44 = sbr.rel (%p42) target = $region20
      $region19: #{tpu_custom_call.1} parent=9 // pred_region
        %s45 = sshllo.u32 0, 1
        loop: start=0, step=1, limit=1
        $region21: #{tpu_custom_call.1} parent=19 // loop_pre_header
          _
        $region22: #{tpu_custom_call.1} parent=19 // loop_header
          %s47 = sphi 0, %s51
          %p48 = scmp.ge.s32.totalorder %s47, 1
          %s52 = sphi %s31, %s31
          %s53 = sphi %s36, %s36
        $region23: #{tpu_custom_call.1} parent=19 // loop_header_branch
          %50 = sbr.rel (%p48) target = $region27
        $region24: #{tpu_custom_call.1} parent=19 // loop_body
          %v54 = vld [vmem:[%s52] sm:%s45]
          %55 = vst [vmem:[%s53] sm:%s45] %v54
          %v56 = vld [vmem:[%s52 + $0x8] sm:%s45]
          %57 = vst [vmem:[%s53 + $0x8] sm:%s45] %v56
        $region25: #{tpu_custom_call.1} parent=19 // loop_footer
          %s51 = sadd.s32 1, %s47
        $region26: #{tpu_custom_call.1} parent=19 // loop_footer_branch
          %46 = sbr.rel target = $region22
        $region27: #{tpu_custom_call.1} parent=19 // loop_exit
          _
      $region20: #{tpu_custom_call.1} parent=9 // pred_fallthru
        _
      // Predicated region
      $region39: #{tpu_custom_call.1} parent=9 // pred_check
        _
      $region40: #{tpu_custom_call.1} parent=9 // pred_check_branch
        %83 = sbr.rel (0) target = $region42
      $region41: #{tpu_custom_call.1} parent=9 // pred_region
        %84 = vsyncadd [#allocation3], 32
      $region42: #{tpu_custom_call.1} parent=9 // pred_fallthru
        _
      %s85 = sadd.s32 %s24, 1
      %s86 = sadd.s32 %s17, %s85
      %s87 = sld [smem:[#allocation5 + %s86]]
      %s88 = sshrl.u32 %s87, 3
      %s89 = sand.u32 %s87, 7
      %s90 = smul.u32 %s88, 16
      %s91 = sadd.s32 %s89, %s90
      %s92 = scalar_lea.vmem %s1, %s91
      %s93 = sshrl.u32 %s85, 3
      %s94 = sand.u32 %s85, 7
      %s95 = smul.u32 %s93, 16
      %s96 = sadd.s32 %s94, %s95
      %s97 = scalar_lea.vmem [#allocation2], %s96
      %p99 = scmp.lt.u32.totalorder 1, 8
      %p100 = pneg %p99
      // Predicated region
      $region43: #{tpu_custom_call.1} parent=9 // pred_check
        _
      $region44: #{tpu_custom_call.1} parent=9 // pred_check_branch
        %102 = sbr.rel (%p99) target = $region46
      $region45: #{tpu_custom_call.1} parent=9 // pred_region
        %s119 = sand.u32 1, 7
        %p120 = scmp.eq.s32.totalorder %s119, 0
        %p121 = pneg %p120
        // Predicated region
        $region58: #{tpu_custom_call.1} parent=45 // pred_check
          _
        $region59: #{tpu_custom_call.1} parent=45 // pred_check_branch
          %123 = sbr.rel (%p120) target = $region61
        $region60: #{tpu_custom_call.1} parent=45 // pred_region
          %s124 = sand.u32 1, 7
          %s125 = ssub.s32 1, %s124
          %s126 = scalar_lea.vmem %s92, %s125
          %s127 = ssub.s32 1, %s124
          %s128 = scalar_lea.vmem %s97, %s127 [#allocation2]
          %s129 = sshllo.u32 0, %s124
          loop: start=0, step=1, limit=1
          $region62: #{tpu_custom_call.1} parent=60 // loop_pre_header
            _
          $region63: #{tpu_custom_call.1} parent=60 // loop_header
            %s131 = sphi 0, %s135
            %p132 = scmp.ge.s32.totalorder %s131, 1
            %s136 = sphi %s126, %s126
            %s137 = sphi %s128, %s128
          $region64: #{tpu_custom_call.1} parent=60 // loop_header_branch
            %134 = sbr.rel (%p132) target = $region68
          $region65: #{tpu_custom_call.1} parent=60 // loop_body
            %v138 = vld [vmem:[%s136] sm:%s129]
            %139 = vst [vmem:[%s137] sm:%s129] %v138
            %v140 = vld [vmem:[%s136 + $0x8] sm:%s129]
            %141 = vst [vmem:[%s137 + $0x8] sm:%s129] %v140
          $region66: #{tpu_custom_call.1} parent=60 // loop_footer
            %s135 = sadd.s32 1, %s131
          $region67: #{tpu_custom_call.1} parent=60 // loop_footer_branch
            %130 = sbr.rel target = $region63
          $region68: #{tpu_custom_call.1} parent=60 // loop_exit
            _
        $region61: #{tpu_custom_call.1} parent=45 // pred_fallthru
          _
      $region46: #{tpu_custom_call.1} parent=9 // pred_fallthru
        _
      // Predicated region
      $region47: #{tpu_custom_call.1} parent=9 // pred_check
        %p103 = pneg %p99
      $region48: #{tpu_custom_call.1} parent=9 // pred_check_branch
        %105 = sbr.rel (%p103) target = $region50
      $region49: #{tpu_custom_call.1} parent=9 // pred_region
        %s106 = sshllo.u32 0, 1
        loop: start=0, step=1, limit=1
        $region51: #{tpu_custom_call.1} parent=49 // loop_pre_header
          _
        $region52: #{tpu_custom_call.1} parent=49 // loop_header
          %s108 = sphi 0, %s112
          %p109 = scmp.ge.s32.totalorder %s108, 1
          %s113 = sphi %s92, %s92
          %s114 = sphi %s97, %s97
        $region53: #{tpu_custom_call.1} parent=49 // loop_header_branch
          %111 = sbr.rel (%p109) target = $region57
        $region54: #{tpu_custom_call.1} parent=49 // loop_body
          %v115 = vld [vmem:[%s113] sm:%s106]
          %116 = vst [vmem:[%s114] sm:%s106] %v115
          %v117 = vld [vmem:[%s113 + $0x8] sm:%s106]
          %118 = vst [vmem:[%s114 + $0x8] sm:%s106] %v117
        $region55: #{tpu_custom_call.1} parent=49 // loop_footer
          %s112 = sadd.s32 1, %s108
        $region56: #{tpu_custom_call.1} parent=49 // loop_footer_branch
          %107 = sbr.rel target = $region52
        $region57: #{tpu_custom_call.1} parent=49 // loop_exit
          _
      $region50: #{tpu_custom_call.1} parent=9 // pred_fallthru
        _
      // Predicated region
      $region69: #{tpu_custom_call.1} parent=9 // pred_check
        _
      $region70: #{tpu_custom_call.1} parent=9 // pred_check_branch
        %144 = sbr.rel (0) target = $region72
      $region71: #{tpu_custom_call.1} parent=9 // pred_region
        %145 = vsyncadd [#allocation3], 32
      $region72: #{tpu_custom_call.1} parent=9 // pred_fallthru
        _
      %s146 = sadd.s32 %s24, 2
      %s147 = sadd.s32 %s17, %s146
      %s148 = sld [smem:[#allocation5 + %s147]]
      %s149 = sshrl.u32 %s148, 3
      %s150 = sand.u32 %s148, 7
      %s151 = smul.u32 %s149, 16
      %s152 = sadd.s32 %s150, %s151
      %s153 = scalar_lea.vmem %s1, %s152
      %s154 = sshrl.u32 %s146, 3
      %s155 = sand.u32 %s146, 7
      %s156 = smul.u32 %s154, 16
      %s157 = sadd.s32 %s155, %s156
      %s158 = scalar_lea.vmem [#allocation2], %s157
      %p160 = scmp.lt.u32.totalorder 1, 8
      %p161 = pneg %p160
      // Predicated region
      $region73: #{tpu_custom_call.1} parent=9 // pred_check
        _
      $region74: #{tpu_custom_call.1} parent=9 // pred_check_branch
        %163 = sbr.rel (%p160) target = $region76
      $region75: #{tpu_custom_call.1} parent=9 // pred_region
        %s180 = sand.u32 1, 7
        %p181 = scmp.eq.s32.totalorder %s180, 0
        %p182 = pneg %p181
        // Predicated region
        $region88: #{tpu_custom_call.1} parent=75 // pred_check
          _
        $region89: #{tpu_custom_call.1} parent=75 // pred_check_branch
          %184 = sbr.rel (%p181) target = $region91
        $region90: #{tpu_custom_call.1} parent=75 // pred_region
          %s185 = sand.u32 1, 7
          %s186 = ssub.s32 1, %s185
          %s187 = scalar_lea.vmem %s153, %s186
          %s188 = ssub.s32 1, %s185
          %s189 = scalar_lea.vmem %s158, %s188 [#allocation2]
          %s190 = sshllo.u32 0, %s185
          loop: start=0, step=1, limit=1
          $region92: #{tpu_custom_call.1} parent=90 // loop_pre_header
            _
          $region93: #{tpu_custom_call.1} parent=90 // loop_header
            %s192 = sphi 0, %s196
            %p193 = scmp.ge.s32.totalorder %s192, 1
            %s197 = sphi %s187, %s187
            %s198 = sphi %s189, %s189
          $region94: #{tpu_custom_call.1} parent=90 // loop_header_branch
            %195 = sbr.rel (%p193) target = $region98
          $region95: #{tpu_custom_call.1} parent=90 // loop_body
            %v199 = vld [vmem:[%s197] sm:%s190]
            %200 = vst [vmem:[%s198] sm:%s190] %v199
            %v201 = vld [vmem:[%s197 + $0x8] sm:%s190]
            %202 = vst [vmem:[%s198 + $0x8] sm:%s190] %v201
          $region96: #{tpu_custom_call.1} parent=90 // loop_footer
            %s196 = sadd.s32 1, %s192
          $region97: #{tpu_custom_call.1} parent=90 // loop_footer_branch
            %191 = sbr.rel target = $region93
          $region98: #{tpu_custom_call.1} parent=90 // loop_exit
            _
        $region91: #{tpu_custom_call.1} parent=75 // pred_fallthru
          _
      $region76: #{tpu_custom_call.1} parent=9 // pred_fallthru
        _
      // Predicated region
      $region77: #{tpu_custom_call.1} parent=9 // pred_check
        %p164 = pneg %p160
      $region78: #{tpu_custom_call.1} parent=9 // pred_check_branch
        %166 = sbr.rel (%p164) target = $region80
      $region79: #{tpu_custom_call.1} parent=9 // pred_region
        %s167 = sshllo.u32 0, 1
        loop: start=0, step=1, limit=1
        $region81: #{tpu_custom_call.1} parent=79 // loop_pre_header
          _
        $region82: #{tpu_custom_call.1} parent=79 // loop_header
          %s169 = sphi 0, %s173
          %p170 = scmp.ge.s32.totalorder %s169, 1
          %s174 = sphi %s153, %s153
          %s175 = sphi %s158, %s158
        $region83: #{tpu_custom_call.1} parent=79 // loop_header_branch
          %172 = sbr.rel (%p170) target = $region87
        $region84: #{tpu_custom_call.1} parent=79 // loop_body
          %v176 = vld [vmem:[%s174] sm:%s167]
          %177 = vst [vmem:[%s175] sm:%s167] %v176
          %v178 = vld [vmem:[%s174 + $0x8] sm:%s167]
          %179 = vst [vmem:[%s175 + $0x8] sm:%s167] %v178
        $region85: #{tpu_custom_call.1} parent=79 // loop_footer
          %s173 = sadd.s32 1, %s169
        $region86: #{tpu_custom_call.1} parent=79 // loop_footer_branch
          %168 = sbr.rel target = $region82
        $region87: #{tpu_custom_call.1} parent=79 // loop_exit
          _
      $region80: #{tpu_custom_call.1} parent=9 // pred_fallthru
        _
      // Predicated region
      $region99: #{tpu_custom_call.1} parent=9 // pred_check
        _
      $region100: #{tpu_custom_call.1} parent=9 // pred_check_branch
        %205 = sbr.rel (0) target = $region102
      $region101: #{tpu_custom_call.1} parent=9 // pred_region
        %206 = vsyncadd [#allocation3], 32
      $region102: #{tpu_custom_call.1} parent=9 // pred_fallthru
        _
      %s207 = sadd.s32 %s24, 3
      %s208 = sadd.s32 %s17, %s207
      %s209 = sld [smem:[#allocation5 + %s208]]
      %s210 = sshrl.u32 %s209, 3
      %s211 = sand.u32 %s209, 7
      %s212 = smul.u32 %s210, 16
      %s213 = sadd.s32 %s211, %s212
      %s214 = scalar_lea.vmem %s1, %s213
      %s215 = sshrl.u32 %s207, 3
      %s216 = sand.u32 %s207, 7
      %s217 = smul.u32 %s215, 16
      %s218 = sadd.s32 %s216, %s217
      %s219 = scalar_lea.vmem [#allocation2], %s218
      %p221 = scmp.lt.u32.totalorder 1, 8
      %p222 = pneg %p221
      // Predicated region
      $region103: #{tpu_custom_call.1} parent=9 // pred_check
        _
      $region104: #{tpu_custom_call.1} parent=9 // pred_check_branch
        %224 = sbr.rel (%p221) target = $region106
      $region105: #{tpu_custom_call.1} parent=9 // pred_region
        %s241 = sand.u32 1, 7
        %p242 = scmp.eq.s32.totalorder %s241, 0
        %p243 = pneg %p242
        // Predicated region
        $region118: #{tpu_custom_call.1} parent=105 // pred_check
          _
        $region119: #{tpu_custom_call.1} parent=105 // pred_check_branch
          %245 = sbr.rel (%p242) target = $region121
        $region120: #{tpu_custom_call.1} parent=105 // pred_region
          %s246 = sand.u32 1, 7
          %s247 = ssub.s32 1, %s246
          %s248 = scalar_lea.vmem %s214, %s247
          %s249 = ssub.s32 1, %s246
          %s250 = scalar_lea.vmem %s219, %s249 [#allocation2]
          %s251 = sshllo.u32 0, %s246
          loop: start=0, step=1, limit=1
          $region122: #{tpu_custom_call.1} parent=120 // loop_pre_header
            _
          $region123: #{tpu_custom_call.1} parent=120 // loop_header
            %s253 = sphi 0, %s257
            %p254 = scmp.ge.s32.totalorder %s253, 1
            %s258 = sphi %s248, %s248
            %s259 = sphi %s250, %s250
          $region124: #{tpu_custom_call.1} parent=120 // loop_header_branch
            %256 = sbr.rel (%p254) target = $region128
          $region125: #{tpu_custom_call.1} parent=120 // loop_body
            %v260 = vld [vmem:[%s258] sm:%s251]
            %261 = vst [vmem:[%s259] sm:%s251] %v260
            %v262 = vld [vmem:[%s258 + $0x8] sm:%s251]
            %263 = vst [vmem:[%s259 + $0x8] sm:%s251] %v262
          $region126: #{tpu_custom_call.1} parent=120 // loop_footer
            %s257 = sadd.s32 1, %s253
          $region127: #{tpu_custom_call.1} parent=120 // loop_footer_branch
            %252 = sbr.rel target = $region123
          $region128: #{tpu_custom_call.1} parent=120 // loop_exit
            _
        $region121: #{tpu_custom_call.1} parent=105 // pred_fallthru
          _
      $region106: #{tpu_custom_call.1} parent=9 // pred_fallthru
        _
      // Predicated region
      $region107: #{tpu_custom_call.1} parent=9 // pred_check
        %p225 = pneg %p221
      $region108: #{tpu_custom_call.1} parent=9 // pred_check_branch
        %227 = sbr.rel (%p225) target = $region110
      $region109: #{tpu_custom_call.1} parent=9 // pred_region
        %s228 = sshllo.u32 0, 1
        loop: start=0, step=1, limit=1
        $region111: #{tpu_custom_call.1} parent=109 // loop_pre_header
          _
        $region112: #{tpu_custom_call.1} parent=109 // loop_header
          %s230 = sphi 0, %s234
          %p231 = scmp.ge.s32.totalorder %s230, 1
          %s235 = sphi %s214, %s214
          %s236 = sphi %s219, %s219
        $region113: #{tpu_custom_call.1} parent=109 // loop_header_branch
          %233 = sbr.rel (%p231) target = $region117
        $region114: #{tpu_custom_call.1} parent=109 // loop_body
          %v237 = vld [vmem:[%s235] sm:%s228]
          %238 = vst [vmem:[%s236] sm:%s228] %v237
          %v239 = vld [vmem:[%s235 + $0x8] sm:%s228]
          %240 = vst [vmem:[%s236 + $0x8] sm:%s228] %v239
        $region115: #{tpu_custom_call.1} parent=109 // loop_footer
          %s234 = sadd.s32 1, %s230
        $region116: #{tpu_custom_call.1} parent=109 // loop_footer_branch
          %229 = sbr.rel target = $region112
        $region117: #{tpu_custom_call.1} parent=109 // loop_exit
          _
      $region110: #{tpu_custom_call.1} parent=9 // pred_fallthru
        _
      // Predicated region
      $region129: #{tpu_custom_call.1} parent=9 // pred_check
        _
      $region130: #{tpu_custom_call.1} parent=9 // pred_check_branch
        %266 = sbr.rel (0) target = $region132
      $region131: #{tpu_custom_call.1} parent=9 // pred_region
        %267 = vsyncadd [#allocation3], 32
      $region132: #{tpu_custom_call.1} parent=9 // pred_fallthru
        _
      %s268 = sadd.s32 %s24, 4
      %s269 = sadd.s32 %s17, %s268
      %s270 = sld [smem:[#allocation5 + %s269]]
      %s271 = sshrl.u32 %s270, 3
      %s272 = sand.u32 %s270, 7
      %s273 = smul.u32 %s271, 16
      %s274 = sadd.s32 %s272, %s273
      %s275 = scalar_lea.vmem %s1, %s274
      %s276 = sshrl.u32 %s268, 3
      %s277 = sand.u32 %s268, 7
      %s278 = smul.u32 %s276, 16
      %s279 = sadd.s32 %s277, %s278
      %s280 = scalar_lea.vmem [#allocation2], %s279
      %p282 = scmp.lt.u32.totalorder 1, 8
      %p283 = pneg %p282
      // Predicated region
      $region133: #{tpu_custom_call.1} parent=9 // pred_check
        _
      $region134: #{tpu_custom_call.1} parent=9 // pred_check_branch
        %285 = sbr.rel (%p282) target = $region136
      $region135: #{tpu_custom_call.1} parent=9 // pred_region
        %s302 = sand.u32 1, 7
        %p303 = scmp.eq.s32.totalorder %s302, 0
        %p304 = pneg %p303
        // Predicated region
        $region148: #{tpu_custom_call.1} parent=135 // pred_check
          _
        $region149: #{tpu_custom_call.1} parent=135 // pred_check_branch
          %306 = sbr.rel (%p303) target = $region151
        $region150: #{tpu_custom_call.1} parent=135 // pred_region
          %s307 = sand.u32 1, 7
          %s308 = ssub.s32 1, %s307
          %s309 = scalar_lea.vmem %s275, %s308
          %s310 = ssub.s32 1, %s307
          %s311 = scalar_lea.vmem %s280, %s310 [#allocation2]
          %s312 = sshllo.u32 0, %s307
          loop: start=0, step=1, limit=1
          $region152: #{tpu_custom_call.1} parent=150 // loop_pre_header
            _
          $region153: #{tpu_custom_call.1} parent=150 // loop_header
            %s314 = sphi 0, %s318
            %p315 = scmp.ge.s32.totalorder %s314, 1
            %s319 = sphi %s309, %s309
            %s320 = sphi %s311, %s311
          $region154: #{tpu_custom_call.1} parent=150 // loop_header_branch
            %317 = sbr.rel (%p315) target = $region158
          $region155: #{tpu_custom_call.1} parent=150 // loop_body
            %v321 = vld [vmem:[%s319] sm:%s312]
            %322 = vst [vmem:[%s320] sm:%s312] %v321
            %v323 = vld [vmem:[%s319 + $0x8] sm:%s312]
            %324 = vst [vmem:[%s320 + $0x8] sm:%s312] %v323
          $region156: #{tpu_custom_call.1} parent=150 // loop_footer
            %s318 = sadd.s32 1, %s314
          $region157: #{tpu_custom_call.1} parent=150 // loop_footer_branch
            %313 = sbr.rel target = $region153
          $region158: #{tpu_custom_call.1} parent=150 // loop_exit
            _
        $region151: #{tpu_custom_call.1} parent=135 // pred_fallthru
          _
      $region136: #{tpu_custom_call.1} parent=9 // pred_fallthru
        _
      // Predicated region
      $region137: #{tpu_custom_call.1} parent=9 // pred_check
        %p286 = pneg %p282
      $region138: #{tpu_custom_call.1} parent=9 // pred_check_branch
        %288 = sbr.rel (%p286) target = $region140
      $region139: #{tpu_custom_call.1} parent=9 // pred_region
        %s289 = sshllo.u32 0, 1
        loop: start=0, step=1, limit=1
        $region141: #{tpu_custom_call.1} parent=139 // loop_pre_header
          _
        $region142: #{tpu_custom_call.1} parent=139 // loop_header
          %s291 = sphi 0, %s295
          %p292 = scmp.ge.s32.totalorder %s291, 1
          %s296 = sphi %s275, %s275
          %s297 = sphi %s280, %s280
        $region143: #{tpu_custom_call.1} parent=139 // loop_header_branch
          %294 = sbr.rel (%p292) target = $region147
        $region144: #{tpu_custom_call.1} parent=139 // loop_body
          %v298 = vld [vmem:[%s296] sm:%s289]
          %299 = vst [vmem:[%s297] sm:%s289] %v298
          %v300 = vld [vmem:[%s296 + $0x8] sm:%s289]
          %301 = vst [vmem:[%s297 + $0x8] sm:%s289] %v300
        $region145: #{tpu_custom_call.1} parent=139 // loop_footer
          %s295 = sadd.s32 1, %s291
        $region146: #{tpu_custom_call.1} parent=139 // loop_footer_branch
          %290 = sbr.rel target = $region142
        $region147: #{tpu_custom_call.1} parent=139 // loop_exit
          _
      $region140: #{tpu_custom_call.1} parent=9 // pred_fallthru
        _
      // Predicated region
      $region159: #{tpu_custom_call.1} parent=9 // pred_check
        _
      $region160: #{tpu_custom_call.1} parent=9 // pred_check_branch
        %327 = sbr.rel (0) target = $region162
      $region161: #{tpu_custom_call.1} parent=9 // pred_region
        %328 = vsyncadd [#allocation3], 32
      $region162: #{tpu_custom_call.1} parent=9 // pred_fallthru
        _
      %s329 = sadd.s32 %s24, 5
      %s330 = sadd.s32 %s17, %s329
      %s331 = sld [smem:[#allocation5 + %s330]]
      %s332 = sshrl.u32 %s331, 3
      %s333 = sand.u32 %s331, 7
      %s334 = smul.u32 %s332, 16
      %s335 = sadd.s32 %s333, %s334
      %s336 = scalar_lea.vmem %s1, %s335
      %s337 = sshrl.u32 %s329, 3
      %s338 = sand.u32 %s329, 7
      %s339 = smul.u32 %s337, 16
      %s340 = sadd.s32 %s338, %s339
      %s341 = scalar_lea.vmem [#allocation2], %s340
      %p343 = scmp.lt.u32.totalorder 1, 8
      %p344 = pneg %p343
      // Predicated region
      $region163: #{tpu_custom_call.1} parent=9 // pred_check
        _
      $region164: #{tpu_custom_call.1} parent=9 // pred_check_branch
        %346 = sbr.rel (%p343) target = $region166
      $region165: #{tpu_custom_call.1} parent=9 // pred_region
        %s363 = sand.u32 1, 7
        %p364 = scmp.eq.s32.totalorder %s363, 0
        %p365 = pneg %p364
        // Predicated region
        $region178: #{tpu_custom_call.1} parent=165 // pred_check
          _
        $region179: #{tpu_custom_call.1} parent=165 // pred_check_branch
          %367 = sbr.rel (%p364) target = $region181
        $region180: #{tpu_custom_call.1} parent=165 // pred_region
          %s368 = sand.u32 1, 7
          %s369 = ssub.s32 1, %s368
          %s370 = scalar_lea.vmem %s336, %s369
          %s371 = ssub.s32 1, %s368
          %s372 = scalar_lea.vmem %s341, %s371 [#allocation2]
          %s373 = sshllo.u32 0, %s368
          loop: start=0, step=1, limit=1
          $region182: #{tpu_custom_call.1} parent=180 // loop_pre_header
            _
          $region183: #{tpu_custom_call.1} parent=180 // loop_header
            %s375 = sphi 0, %s379
            %p376 = scmp.ge.s32.totalorder %s375, 1
            %s380 = sphi %s370, %s370
            %s381 = sphi %s372, %s372
          $region184: #{tpu_custom_call.1} parent=180 // loop_header_branch
            %378 = sbr.rel (%p376) target = $region188
          $region185: #{tpu_custom_call.1} parent=180 // loop_body
            %v382 = vld [vmem:[%s380] sm:%s373]
            %383 = vst [vmem:[%s381] sm:%s373] %v382
            %v384 = vld [vmem:[%s380 + $0x8] sm:%s373]
            %385 = vst [vmem:[%s381 + $0x8] sm:%s373] %v384
          $region186: #{tpu_custom_call.1} parent=180 // loop_footer
            %s379 = sadd.s32 1, %s375
          $region187: #{tpu_custom_call.1} parent=180 // loop_footer_branch
            %374 = sbr.rel target = $region183
          $region188: #{tpu_custom_call.1} parent=180 // loop_exit
            _
        $region181: #{tpu_custom_call.1} parent=165 // pred_fallthru
          _
      $region166: #{tpu_custom_call.1} parent=9 // pred_fallthru
        _
      // Predicated region
      $region167: #{tpu_custom_call.1} parent=9 // pred_check
        %p347 = pneg %p343
      $region168: #{tpu_custom_call.1} parent=9 // pred_check_branch
        %349 = sbr.rel (%p347) target = $region170
      $region169: #{tpu_custom_call.1} parent=9 // pred_region
        %s350 = sshllo.u32 0, 1
        loop: start=0, step=1, limit=1
        $region171: #{tpu_custom_call.1} parent=169 // loop_pre_header
          _
        $region172: #{tpu_custom_call.1} parent=169 // loop_header
          %s352 = sphi 0, %s356
          %p353 = scmp.ge.s32.totalorder %s352, 1
          %s357 = sphi %s336, %s336
          %s358 = sphi %s341, %s341
        $region173: #{tpu_custom_call.1} parent=169 // loop_header_branch
          %355 = sbr.rel (%p353) target = $region177
        $region174: #{tpu_custom_call.1} parent=169 // loop_body
          %v359 = vld [vmem:[%s357] sm:%s350]
          %360 = vst [vmem:[%s358] sm:%s350] %v359
          %v361 = vld [vmem:[%s357 + $0x8] sm:%s350]
          %362 = vst [vmem:[%s358 + $0x8] sm:%s350] %v361
        $region175: #{tpu_custom_call.1} parent=169 // loop_footer
          %s356 = sadd.s32 1, %s352
        $region176: #{tpu_custom_call.1} parent=169 // loop_footer_branch
          %351 = sbr.rel target = $region172
        $region177: #{tpu_custom_call.1} parent=169 // loop_exit
          _
      $region170: #{tpu_custom_call.1} parent=9 // pred_fallthru
        _
      // Predicated region
      $region189: #{tpu_custom_call.1} parent=9 // pred_check
        _
      $region190: #{tpu_custom_call.1} parent=9 // pred_check_branch
        %388 = sbr.rel (0) target = $region192
      $region191: #{tpu_custom_call.1} parent=9 // pred_region
        %389 = vsyncadd [#allocation3], 32
      $region192: #{tpu_custom_call.1} parent=9 // pred_fallthru
        _
      %s390 = sadd.s32 %s24, 6
      %s391 = sadd.s32 %s17, %s390
      %s392 = sld [smem:[#allocation5 + %s391]]
      %s393 = sshrl.u32 %s392, 3
      %s394 = sand.u32 %s392, 7
      %s395 = smul.u32 %s393, 16
      %s396 = sadd.s32 %s394, %s395
      %s397 = scalar_lea.vmem %s1, %s396
      %s398 = sshrl.u32 %s390, 3
      %s399 = sand.u32 %s390, 7
      %s400 = smul.u32 %s398, 16
      %s401 = sadd.s32 %s399, %s400
      %s402 = scalar_lea.vmem [#allocation2], %s401
      %p404 = scmp.lt.u32.totalorder 1, 8
      %p405 = pneg %p404
      // Predicated region
      $region193: #{tpu_custom_call.1} parent=9 // pred_check
        _
      $region194: #{tpu_custom_call.1} parent=9 // pred_check_branch
        %407 = sbr.rel (%p404) target = $region196
      $region195: #{tpu_custom_call.1} parent=9 // pred_region
        %s424 = sand.u32 1, 7
        %p425 = scmp.eq.s32.totalorder %s424, 0
        %p426 = pneg %p425
        // Predicated region
        $region208: #{tpu_custom_call.1} parent=195 // pred_check
          _
        $region209: #{tpu_custom_call.1} parent=195 // pred_check_branch
          %428 = sbr.rel (%p425) target = $region211
        $region210: #{tpu_custom_call.1} parent=195 // pred_region
          %s429 = sand.u32 1, 7
          %s430 = ssub.s32 1, %s429
          %s431 = scalar_lea.vmem %s397, %s430
          %s432 = ssub.s32 1, %s429
          %s433 = scalar_lea.vmem %s402, %s432 [#allocation2]
          %s434 = sshllo.u32 0, %s429
          loop: start=0, step=1, limit=1
          $region212: #{tpu_custom_call.1} parent=210 // loop_pre_header
            _
          $region213: #{tpu_custom_call.1} parent=210 // loop_header
            %s436 = sphi 0, %s440
            %p437 = scmp.ge.s32.totalorder %s436, 1
            %s441 = sphi %s431, %s431
            %s442 = sphi %s433, %s433
          $region214: #{tpu_custom_call.1} parent=210 // loop_header_branch
            %439 = sbr.rel (%p437) target = $region218
          $region215: #{tpu_custom_call.1} parent=210 // loop_body
            %v443 = vld [vmem:[%s441] sm:%s434]
            %444 = vst [vmem:[%s442] sm:%s434] %v443
            %v445 = vld [vmem:[%s441 + $0x8] sm:%s434]
            %446 = vst [vmem:[%s442 + $0x8] sm:%s434] %v445
          $region216: #{tpu_custom_call.1} parent=210 // loop_footer
            %s440 = sadd.s32 1, %s436
          $region217: #{tpu_custom_call.1} parent=210 // loop_footer_branch
            %435 = sbr.rel target = $region213
          $region218: #{tpu_custom_call.1} parent=210 // loop_exit
            _
        $region211: #{tpu_custom_call.1} parent=195 // pred_fallthru
          _
      $region196: #{tpu_custom_call.1} parent=9 // pred_fallthru
        _
      // Predicated region
      $region197: #{tpu_custom_call.1} parent=9 // pred_check
        %p408 = pneg %p404
      $region198: #{tpu_custom_call.1} parent=9 // pred_check_branch
        %410 = sbr.rel (%p408) target = $region200
      $region199: #{tpu_custom_call.1} parent=9 // pred_region
        %s411 = sshllo.u32 0, 1
        loop: start=0, step=1, limit=1
        $region201: #{tpu_custom_call.1} parent=199 // loop_pre_header
          _
        $region202: #{tpu_custom_call.1} parent=199 // loop_header
          %s413 = sphi 0, %s417
          %p414 = scmp.ge.s32.totalorder %s413, 1
          %s418 = sphi %s397, %s397
          %s419 = sphi %s402, %s402
        $region203: #{tpu_custom_call.1} parent=199 // loop_header_branch
          %416 = sbr.rel (%p414) target = $region207
        $region204: #{tpu_custom_call.1} parent=199 // loop_body
          %v420 = vld [vmem:[%s418] sm:%s411]
          %421 = vst [vmem:[%s419] sm:%s411] %v420
          %v422 = vld [vmem:[%s418 + $0x8] sm:%s411]
          %423 = vst [vmem:[%s419 + $0x8] sm:%s411] %v422
        $region205: #{tpu_custom_call.1} parent=199 // loop_footer
          %s417 = sadd.s32 1, %s413
        $region206: #{tpu_custom_call.1} parent=199 // loop_footer_branch
          %412 = sbr.rel target = $region202
        $region207: #{tpu_custom_call.1} parent=199 // loop_exit
          _
      $region200: #{tpu_custom_call.1} parent=9 // pred_fallthru
        _
      // Predicated region
      $region219: #{tpu_custom_call.1} parent=9 // pred_check
        _
      $region220: #{tpu_custom_call.1} parent=9 // pred_check_branch
        %449 = sbr.rel (0) target = $region222
      $region221: #{tpu_custom_call.1} parent=9 // pred_region
        %450 = vsyncadd [#allocation3], 32
      $region222: #{tpu_custom_call.1} parent=9 // pred_fallthru
        _
      %s451 = sadd.s32 %s24, 7
      %s452 = sadd.s32 %s17, %s451
      %s453 = sld [smem:[#allocation5 + %s452]]
      %s454 = sshrl.u32 %s453, 3
      %s455 = sand.u32 %s453, 7
      %s456 = smul.u32 %s454, 16
      %s457 = sadd.s32 %s455, %s456
      %s458 = scalar_lea.vmem %s1, %s457
      %s459 = sshrl.u32 %s451, 3
      %s460 = sand.u32 %s451, 7
      %s461 = smul.u32 %s459, 16
      %s462 = sadd.s32 %s460, %s461
      %s463 = scalar_lea.vmem [#allocation2], %s462
      %p465 = scmp.lt.u32.totalorder 1, 8
      %p466 = pneg %p465
      // Predicated region
      $region223: #{tpu_custom_call.1} parent=9 // pred_check
        _
      $region224: #{tpu_custom_call.1} parent=9 // pred_check_branch
        %468 = sbr.rel (%p465) target = $region226
      $region225: #{tpu_custom_call.1} parent=9 // pred_region
        %s485 = sand.u32 1, 7
        %p486 = scmp.eq.s32.totalorder %s485, 0
        %p487 = pneg %p486
        // Predicated region
        $region238: #{tpu_custom_call.1} parent=225 // pred_check
          _
        $region239: #{tpu_custom_call.1} parent=225 // pred_check_branch
          %489 = sbr.rel (%p486) target = $region241
        $region240: #{tpu_custom_call.1} parent=225 // pred_region
          %s490 = sand.u32 1, 7
          %s491 = ssub.s32 1, %s490
          %s492 = scalar_lea.vmem %s458, %s491
          %s493 = ssub.s32 1, %s490
          %s494 = scalar_lea.vmem %s463, %s493 [#allocation2]
          %s495 = sshllo.u32 0, %s490
          loop: start=0, step=1, limit=1
          $region242: #{tpu_custom_call.1} parent=240 // loop_pre_header
            _
          $region243: #{tpu_custom_call.1} parent=240 // loop_header
            %s497 = sphi 0, %s501
            %p498 = scmp.ge.s32.totalorder %s497, 1
            %s502 = sphi %s492, %s492
            %s503 = sphi %s494, %s494
          $region244: #{tpu_custom_call.1} parent=240 // loop_header_branch
            %500 = sbr.rel (%p498) target = $region248
          $region245: #{tpu_custom_call.1} parent=240 // loop_body
            %v504 = vld [vmem:[%s502] sm:%s495]
            %505 = vst [vmem:[%s503] sm:%s495] %v504
            %v506 = vld [vmem:[%s502 + $0x8] sm:%s495]
            %507 = vst [vmem:[%s503 + $0x8] sm:%s495] %v506
          $region246: #{tpu_custom_call.1} parent=240 // loop_footer
            %s501 = sadd.s32 1, %s497
          $region247: #{tpu_custom_call.1} parent=240 // loop_footer_branch
            %496 = sbr.rel target = $region243
          $region248: #{tpu_custom_call.1} parent=240 // loop_exit
            _
        $region241: #{tpu_custom_call.1} parent=225 // pred_fallthru
          _
      $region226: #{tpu_custom_call.1} parent=9 // pred_fallthru
        _
      // Predicated region
      $region227: #{tpu_custom_call.1} parent=9 // pred_check
        %p469 = pneg %p465
      $region228: #{tpu_custom_call.1} parent=9 // pred_check_branch
        %471 = sbr.rel (%p469) target = $region230
      $region229: #{tpu_custom_call.1} parent=9 // pred_region
        %s472 = sshllo.u32 0, 1
        loop: start=0, step=1, limit=1
        $region231: #{tpu_custom_call.1} parent=229 // loop_pre_header
          _
        $region232: #{tpu_custom_call.1} parent=229 // loop_header
          %s474 = sphi 0, %s478
          %p475 = scmp.ge.s32.totalorder %s474, 1
          %s479 = sphi %s458, %s458
          %s480 = sphi %s463, %s463
        $region233: #{tpu_custom_call.1} parent=229 // loop_header_branch
          %477 = sbr.rel (%p475) target = $region237
        $region234: #{tpu_custom_call.1} parent=229 // loop_body
          %v481 = vld [vmem:[%s479] sm:%s472]
          %482 = vst [vmem:[%s480] sm:%s472] %v481
          %v483 = vld [vmem:[%s479 + $0x8] sm:%s472]
          %484 = vst [vmem:[%s480 + $0x8] sm:%s472] %v483
        $region235: #{tpu_custom_call.1} parent=229 // loop_footer
          %s478 = sadd.s32 1, %s474
        $region236: #{tpu_custom_call.1} parent=229 // loop_footer_branch
          %473 = sbr.rel target = $region232
        $region237: #{tpu_custom_call.1} parent=229 // loop_exit
          _
      $region230: #{tpu_custom_call.1} parent=9 // pred_fallthru
        _
      // Predicated region
      $region249: #{tpu_custom_call.1} parent=9 // pred_check
        _
      $region250: #{tpu_custom_call.1} parent=9 // pred_check_branch
        %510 = sbr.rel (0) target = $region252
      $region251: #{tpu_custom_call.1} parent=9 // pred_region
        %511 = vsyncadd [#allocation3], 32
      $region252: #{tpu_custom_call.1} parent=9 // pred_fallthru
        _
    $region10: #{tpu_custom_call.1} parent=1 // loop_footer
      %s23 = sadd.s32 1, %s19
    $region11: #{tpu_custom_call.1} parent=1 // loop_footer_branch
      %18 = sbr.rel target = $region7
    $region12: #{tpu_custom_call.1} parent=1 // loop_exit
      _
    %s512 = smul.u32 8, 16
    %s513 = smul.u32 %s512, 2
    %s514 = sshll.u32 %s513, 4
    %515 = dma.done [#allocation3], %s514
    %v516 = vld [vmem:[#allocation2] sm:$0xff]
    %v517 = vld [vmem:[#allocation2 + $0x10] sm:$0xff]
    %v518 = vld [vmem:[#allocation2 + $0x20] sm:$0xff]
    %v519 = vld [vmem:[#allocation2 + $0x30] sm:$0xff]
    %v520 = vld [vmem:[#allocation2 + $0x40] sm:$0xff]
    %v521 = vld [vmem:[#allocation2 + $0x50] sm:$0xff]
    %v522 = vld [vmem:[#allocation2 + $0x60] sm:$0xff]
    %v523 = vld [vmem:[#allocation2 + $0x70] sm:$0xff]
    %v524 = vld [vmem:[#allocation2 + $0x80] sm:$0xff]
    %v525 = vld [vmem:[#allocation2 + $0x90] sm:$0xff]
    %v526 = vld [vmem:[#allocation2 + $0xa0] sm:$0xff]
    %v527 = vld [vmem:[#allocation2 + $0xb0] sm:$0xff]
    %v528 = vld [vmem:[#allocation2 + $0xc0] sm:$0xff]
    %v529 = vld [vmem:[#allocation2 + $0xd0] sm:$0xff]
    %v530 = vld [vmem:[#allocation2 + $0xe0] sm:$0xff]
    %v531 = vld [vmem:[#allocation2 + $0xf0] sm:$0xff]
    %v532 = vld [vmem:[#allocation2 + $0x8] sm:$0xff]
    %v533 = vld [vmem:[#allocation2 + $0x18] sm:$0xff]
    %v534 = vld [vmem:[#allocation2 + $0x28] sm:$0xff]
    %v535 = vld [vmem:[#allocation2 + $0x38] sm:$0xff]
    %v536 = vld [vmem:[#allocation2 + $0x48] sm:$0xff]
    %v537 = vld [vmem:[#allocation2 + $0x58] sm:$0xff]
    %v538 = vld [vmem:[#allocation2 + $0x68] sm:$0xff]
    %v539 = vld [vmem:[#allocation2 + $0x78] sm:$0xff]
    %v540 = vld [vmem:[#allocation2 + $0x88] sm:$0xff]
    %v541 = vld [vmem:[#allocation2 + $0x98] sm:$0xff]
    %v542 = vld [vmem:[#allocation2 + $0xa8] sm:$0xff]
    %v543 = vld [vmem:[#allocation2 + $0xb8] sm:$0xff]
    %v544 = vld [vmem:[#allocation2 + $0xc8] sm:$0xff]
    %v545 = vld [vmem:[#allocation2 + $0xd8] sm:$0xff]
    %v546 = vld [vmem:[#allocation2 + $0xe8] sm:$0xff]
    %v547 = vld [vmem:[#allocation2 + $0xf8] sm:$0xff]
    %v548 = vld [vmem:[%s2] sm:$0xff]
    %vm549 = vcmask 64512
    %v551 = vsel %vm549, %v532, 0
    %v554 = vsel %vm549, %v533, 0
    %v557 = vsel %vm549, %v534, 0
    %v560 = vsel %vm549, %v535, 0
    %v563 = vsel %vm549, %v536, 0
    %v566 = vsel %vm549, %v537, 0
    %v569 = vsel %vm549, %v538, 0
    %v572 = vsel %vm549, %v539, 0
    %v575 = vsel %vm549, %v540, 0
    %v578 = vsel %vm549, %v541, 0
    %v581 = vsel %vm549, %v542, 0
    %v584 = vsel %vm549, %v543, 0
    %v587 = vsel %vm549, %v544, 0
    %v590 = vsel %vm549, %v545, 0
    %v593 = vsel %vm549, %v546, 0
    %v596 = vsel %vm549, %v547, 0
    %598 = vmatprep.subr.mxu0 0.0
    %599 = vmatpush1.msra.mxu0 %v548
    %600 = vmatprep.subr.mxu0 0.0
    %601 = vmatpush1.msra.mxu0 0.0
    %602 = vmatprep.subr.mxu0 0.0
    %603 = vmatpush1.msra.mxu0 0.0
    %604 = vmatprep.subr.mxu0 0.0
    %605 = vmatpush1.msra.mxu0 0.0
    %606 = vmatprep.subr.mxu0 0.0
    %607 = vmatpush1.msra.mxu0 0.0
    %608 = vmatprep.subr.mxu0 0.0
    %609 = vmatpush1.msra.mxu0 0.0
    %610 = vmatprep.subr.mxu0 0.0
    %611 = vmatpush1.msra.mxu0 0.0
    %612 = vmatprep.subr.mxu0 0.0
    %613 = vmatpush1.msra.mxu0 0.0
    %614 = vmatprep.subr.mxu0 0.0
    %615 = vmatpush1.msra.mxu0 0.0
    %616 = vmatprep.subr.mxu0 0.0
    %617 = vmatpush1.msra.mxu0 0.0
    %618 = vmatprep.subr.mxu0 0.0
    %619 = vmatpush1.msra.mxu0 0.0
    %620 = vmatprep.subr.mxu0 0.0
    %621 = vmatpush1.msra.mxu0 0.0
    %622 = vmatprep.subr.mxu0 0.0
    %623 = vmatpush1.msra.mxu0 0.0
    %624 = vmatprep.subr.mxu0 0.0
    %625 = vmatpush1.msra.mxu0 0.0
    %626 = vmatprep.subr.mxu0 0.0
    %627 = vmatpush1.msra.mxu0 0.0
    %628 = vmatprep.subr.mxu0 0.0
    %629 = vmatpush1.msra.mxu0 0.0
    %630 = vmatprep.subr.mxu0 0.0
    %631 = vmatpush1.msra.mxu0 0.0
    %632 = vmatprep.subr.mxu0 0.0
    %633 = vmatpush1.msra.mxu0 0.0
    %634 = vmatprep.subr.mxu0 0.0
    %635 = vmatpush1.msra.mxu0 0.0
    %636 = vmatprep.subr.mxu0 0.0
    %637 = vmatpush1.msra.mxu0 0.0
    %638 = vmatprep.subr.mxu0 0.0
    %639 = vmatpush1.msra.mxu0 0.0
    %640 = vmatprep.subr.mxu0 0.0
    %641 = vmatpush1.msra.mxu0 0.0
    %642 = vmatprep.subr.mxu0 0.0
    %643 = vmatpush1.msra.mxu0 0.0
    %644 = vmatprep.subr.mxu0 0.0
    %645 = vmatpush1.msra.mxu0 0.0
    %646 = vmatprep.subr.mxu0 0.0
    %647 = vmatpush1.msra.mxu0 0.0
    %648 = vmatprep.subr.mxu0 0.0
    %649 = vmatpush1.msra.mxu0 0.0
    %650 = vmatprep.subr.mxu0 0.0
    %651 = vmatpush1.msra.mxu0 0.0
    %652 = vmatprep.subr.mxu0 0.0
    %653 = vmatpush1.msra.mxu0 0.0
    %654 = vmatprep.subr.mxu0 0.0
    %655 = vmatpush1.msra.mxu0 0.0
    %656 = vmatprep.subr.mxu0 0.0
    %657 = vmatpush1.msra.mxu0 0.0
    %658 = vmatprep.subr.mxu0 0.0
    %659 = vmatpush1.msra.mxu0 0.0
    %660 = vmatprep.subr.mxu0 0.0
    %661 = vmatpush1.msra.mxu0 0.0
    %662 = vmatprep.mubr.f32.mxu0 0.0
    %663 = vmatmul.mubr.f32.gmra.mrb[0].mxu0 %v551
    %v664 = vpop.f32.mrb[0].mxu0
    %v665 = vadd.f32 0.0, %v664
    %v666 = vpop.f32.mrb[0].mxu0
    %667 = vmatprep.mubr.f32.mxu0 0.0
    %668 = vmatmul.mubr.f32.gmra.mrb[0].mxu0 %v554
    %v669 = vpop.f32.mrb[0].mxu0
    %v670 = vadd.f32 0.0, %v669
    %v671 = vpop.f32.mrb[0].mxu0
    %672 = vmatprep.mubr.f32.mxu0 0.0
    %673 = vmatmul.mubr.f32.gmra.mrb[0].mxu0 %v557
    %v674 = vpop.f32.mrb[0].mxu0
    %v675 = vadd.f32 0.0, %v674
    %v676 = vpop.f32.mrb[0].mxu0
    %677 = vmatprep.mubr.f32.mxu0 0.0
    %678 = vmatmul.mubr.f32.gmra.mrb[0].mxu0 %v560
    %v679 = vpop.f32.mrb[0].mxu0
    %v680 = vadd.f32 0.0, %v679
    %v681 = vpop.f32.mrb[0].mxu0
    %682 = vmatprep.mubr.f32.mxu0 0.0
    %683 = vmatmul.mubr.f32.gmra.mrb[0].mxu0 %v563
    %v684 = vpop.f32.mrb[0].mxu0
    %v685 = vadd.f32 0.0, %v684
    %v686 = vpop.f32.mrb[0].mxu0
    %687 = vmatprep.mubr.f32.mxu0 0.0
    %688 = vmatmul.mubr.f32.gmra.mrb[0].mxu0 %v566
    %v689 = vpop.f32.mrb[0].mxu0
    %v690 = vadd.f32 0.0, %v689
    %v691 = vpop.f32.mrb[0].mxu0
    %692 = vmatprep.mubr.f32.mxu0 0.0
    %693 = vmatmul.mubr.f32.gmra.mrb[0].mxu0 %v569
    %v694 = vpop.f32.mrb[0].mxu0
    %v695 = vadd.f32 0.0, %v694
    %v696 = vpop.f32.mrb[0].mxu0
    %697 = vmatprep.mubr.f32.mxu0 0.0
    %698 = vmatmul.mubr.f32.gmra.mrb[0].mxu0 %v572
    %v699 = vpop.f32.mrb[0].mxu0
    %v700 = vadd.f32 0.0, %v699
    %v701 = vpop.f32.mrb[0].mxu0
    %702 = vmatprep.mubr.f32.mxu0 0.0
    %703 = vmatmul.mubr.f32.gmra.mrb[0].mxu0 %v575
    %v704 = vpop.f32.mrb[0].mxu0
    %v705 = vadd.f32 0.0, %v704
    %v706 = vpop.f32.mrb[0].mxu0
    %707 = vmatprep.mubr.f32.mxu0 0.0
    %708 = vmatmul.mubr.f32.gmra.mrb[0].mxu0 %v578
    %v709 = vpop.f32.mrb[0].mxu0
    %v710 = vadd.f32 0.0, %v709
    %v711 = vpop.f32.mrb[0].mxu0
    %712 = vmatprep.mubr.f32.mxu0 0.0
    %713 = vmatmul.mubr.f32.gmra.mrb[0].mxu0 %v581
    %v714 = vpop.f32.mrb[0].mxu0
    %v715 = vadd.f32 0.0, %v714
    %v716 = vpop.f32.mrb[0].mxu0
    %717 = vmatprep.mubr.f32.mxu0 0.0
    %718 = vmatmul.mubr.f32.gmra.mrb[0].mxu0 %v584
    %v719 = vpop.f32.mrb[0].mxu0
    %v720 = vadd.f32 0.0, %v719
    %v721 = vpop.f32.mrb[0].mxu0
    %722 = vmatprep.mubr.f32.mxu0 0.0
    %723 = vmatmul.mubr.f32.gmra.mrb[0].mxu0 %v587
    %v724 = vpop.f32.mrb[0].mxu0
    %v725 = vadd.f32 0.0, %v724
    %v726 = vpop.f32.mrb[0].mxu0
    %727 = vmatprep.mubr.f32.mxu0 0.0
    %728 = vmatmul.mubr.f32.gmra.mrb[0].mxu0 %v590
    %v729 = vpop.f32.mrb[0].mxu0
    %v730 = vadd.f32 0.0, %v729
    %v731 = vpop.f32.mrb[0].mxu0
    %732 = vmatprep.mubr.f32.mxu0 0.0
    %733 = vmatmul.mubr.f32.gmra.mrb[0].mxu0 %v593
    %v734 = vpop.f32.mrb[0].mxu0
    %v735 = vadd.f32 0.0, %v734
    %v736 = vpop.f32.mrb[0].mxu0
    %737 = vmatprep.mubr.f32.mxu0 0.0
    %738 = vmatmul.mubr.f32.gmra.mrb[0].mxu0 %v596
    %v739 = vpop.f32.mrb[0].mxu0
    %v740 = vadd.f32 0.0, %v739
    %v741 = vpop.f32.mrb[0].mxu0
    %742 = vdwg.mxu0
    %v743 = vadd.f32 %v516, %v665
    %v744 = vadd.f32 %v517, %v670
    %v745 = vadd.f32 %v518, %v675
    %v746 = vadd.f32 %v519, %v680
    %v747 = vadd.f32 %v520, %v685
    %v748 = vadd.f32 %v521, %v690
    %v749 = vadd.f32 %v522, %v695
    %v750 = vadd.f32 %v523, %v700
    %v751 = vadd.f32 %v524, %v705
    %v752 = vadd.f32 %v525, %v710
    %v753 = vadd.f32 %v526, %v715
    %v754 = vadd.f32 %v527, %v720
    %v755 = vadd.f32 %v528, %v725
    %v756 = vadd.f32 %v529, %v730
    %v757 = vadd.f32 %v530, %v735
    %v758 = vadd.f32 %v531, %v740
    %759 = vst [vmem:[#allocation6] sm:$0xff] %v743
    %760 = vst [vmem:[#allocation6 + $0x8] sm:$0xff] %v744
    %761 = vst [vmem:[#allocation6 + $0x10] sm:$0xff] %v745
    %762 = vst [vmem:[#allocation6 + $0x18] sm:$0xff] %v746
    %763 = vst [vmem:[#allocation6 + $0x20] sm:$0xff] %v747
    %764 = vst [vmem:[#allocation6 + $0x28] sm:$0xff] %v748
    %765 = vst [vmem:[#allocation6 + $0x30] sm:$0xff] %v749
    %766 = vst [vmem:[#allocation6 + $0x38] sm:$0xff] %v750
    %767 = vst [vmem:[#allocation6 + $0x40] sm:$0xff] %v751
    %768 = vst [vmem:[#allocation6 + $0x48] sm:$0xff] %v752
    %769 = vst [vmem:[#allocation6 + $0x50] sm:$0xff] %v753
    %770 = vst [vmem:[#allocation6 + $0x58] sm:$0xff] %v754
    %771 = vst [vmem:[#allocation6 + $0x60] sm:$0xff] %v755
    %772 = vst [vmem:[#allocation6 + $0x68] sm:$0xff] %v756
    %773 = vst [vmem:[#allocation6 + $0x70] sm:$0xff] %v757
    %774 = vst [vmem:[#allocation6 + $0x78] sm:$0xff] %v758
    // Predicated region
    $region253: #{tpu_custom_call.1} parent=1 // pred_check
      _
    $region254: #{tpu_custom_call.1} parent=1 // pred_check_branch
      %776 = sbr.rel (0) target = $region256
    $region255: #{tpu_custom_call.1} parent=1 // pred_region
      %s778 = ssub.s32 2048, 2048
      %779 = vsyncadd [#allocation7], %s778
      %s780 = sshll.u32 [#allocation6], 4
      %s781 = int_to_ptr.vmem [resolvable:$true] %s780
      %786 = dma.vmem_to_hbm [thread:$0]  %s781, 2048, %s3, [#allocation7], 128, 128, 8
    $region256: #{tpu_custom_call.1} parent=1 // pred_fallthru
      _
    // Predicated region
    $region257: #{tpu_custom_call.1} parent=1 // pred_check
      _
    $region258: #{tpu_custom_call.1} parent=1 // pred_check_branch
      %788 = sbr.rel (0) target = $region260
    $region259: #{tpu_custom_call.1} parent=1 // pred_region
      %789 = dma.done [#allocation7], 2048
    $region260: #{tpu_custom_call.1} parent=1 // pred_fallthru
      _
    %790 = vsyncpa [#allocation7], 1
  %791 = vsyncmov [#allocation3]
  %s792 = vpop.sfrf %791
  %p793 = scmp.eq.s32.totalorder %s792, 0
  %p794 = pneg %p793
  %796 = shalt.err (%p794)

</llo_original>
